<compile_context>
chip_gen: v7x
topology: tpu7x:2x2x1
jax: 0.10.0
libtpu: 0.0.40
codegen_flags: <defaults>
</compile_context>

<pallas_src>
import jax
import jax.numpy as jnp
from jax.experimental import pallas as pl
from jax.experimental.pallas import tpu as pltpu


def _round_up(x, m):
    return (x + m - 1) // m * m


# ----------------------------- kernels ---------------------------------------

def _linear_single_k_kernel(x_ref, w_ref, b_ref, o_ref):
    # x_ref: (TM, Kp) f32, w_ref: (Kp, N) bf16, b_ref: (1, N) f32, o_ref: (TM, N) f32
    x_bf = x_ref[...].astype(jnp.bfloat16)          # VPU cast, hidden under DMA
    o_ref[...] = (
        jnp.dot(x_bf, w_ref[...], preferred_element_type=jnp.float32) + b_ref[...]
    )


def _linear_ktiled_kernel(x_ref, w_ref, b_ref, o_ref):
    # K-reduction grid; accumulate directly into the resident f32 output block.
    k = pl.program_id(1)
    x_bf = x_ref[...].astype(jnp.bfloat16)
    part = jnp.dot(x_bf, w_ref[...], preferred_element_type=jnp.float32)

    @pl.when(k == 0)
    def _():
        o_ref[...] = part + b_ref[...]

    @pl.when(k > 0)
    def _():
        o_ref[...] += part


# ----------------------------- wrapper ----------------------------------------

def prepare_params(w_kt, b):
    """One-time parameter prep (hoisted out of the per-call path).

    w_kt: (K, 10) f32 (= PyTorch weight transposed).  Returns:
      w_p: (Kp, 10) bf16, zero-padded along K to a multiple of 128.  The output
           (lane) dimension 10 is deliberately NOT padded in HBM.
      b_p: (1, 10) f32.
    """
    K, N = w_kt.shape
    Kp = _round_up(K, 128)
    w_p = w_kt.astype(jnp.bfloat16)
    if Kp != K:
        w_p = jnp.zeros((Kp, N), jnp.bfloat16).at[:K, :].set(w_p)
    b_p = b.astype(jnp.float32).reshape(1, N)
    return w_p, b_p


def simple_model_forward(x_nchw, w_p, b_p):
    """Forward of SimpleModel: Flatten -> Linear(3*S*S, 10)."""
    B = x_nchw.shape[0]
    K = x_nchw.shape[1] * x_nchw.shape[2] * x_nchw.shape[3]
    Kp, N = w_p.shape
    assert Kp == _round_up(K, 128)

    # nn.Flatten on NCHW -> (B, 3*S*S); pure layout glue in XLA.
    x_flat = x_nchw.reshape(B, K).astype(jnp.float32)

    # ---- tiling --------------------------------------------------------------
    # M (batch) tile: multiple of 16 at small batch (bf16 sublane packing),
    # 128 / 256 at large batch.
    if B >= 512:
        TM = 256
    elif B >= 128:
        TM = 128
    else:
        TM = _round_up(B, 16)
    Bp = _round_up(B, TM)

    # K tile with zero padding waste.
    if Kp <= 4096:
        TK = Kp                      # single K tile -> no reduction grid at all
    else:
        TK = 128
        for t in range(2048, 127, -128):
            if Kp % t == 0:
                TK = t
                break
    k_tiles = Kp // TK
    m_tiles = Bp // TM

    # Zero-pad x only when B / K are misaligned (pad stays f32; the bf16 cast
    # happens inside the kernel, so aligned shapes hit HBM exactly once).
    if (Bp != B) or (Kp != K):
        x_p = jnp.zeros((Bp, Kp), jnp.float32).at[:B, :K].set(x_flat)
    else:
        x_p = x_flat

    # Double-buffered VMEM footprint (N rounds up to one 128-lane tile in VMEM):
    #   2 * (x: TM*TK*4  +  w: TK*128*2  +  out: TM*128*4  +  bias: 8*128*4)
    NP = 128
    footprint = 2 * (TM * TK * 4 + TK * NP * 2 + TM * NP * 4 + 8 * NP * 4)
    vmem_limit = int(min(max(4 << 20, 2 * footprint), 32 << 20))

    cost = pl.CostEstimate(
        flops=2 * Bp * Kp * N,
        transcendentals=0,
        bytes_accessed=int(
            Bp * Kp * 4              # x (f32) read
            + m_tiles * Kp * N * 2   # w (bf16) read, re-fetched per M tile
            + Bp * N * 4             # output (f32) write
            + N * 4                  # bias
        ),
    )

    if k_tiles == 1:
        out = pl.pallas_call(
            _linear_single_k_kernel,
            out_shape=jax.ShapeDtypeStruct((Bp, N), jnp.float32),
            grid_spec=pltpu.PrefetchScalarGridSpec(
                num_scalar_prefetch=0,
                grid=(m_tiles,),
                in_specs=[
                    pl.BlockSpec((TM, Kp), lambda i: (i, 0)),   # x
                    pl.BlockSpec((Kp, N), lambda i: (0, 0)),    # w (full, N unpadded)
                    pl.BlockSpec((1, N), lambda i: (0, 0)),     # bias
                ],
                out_specs=pl.BlockSpec((TM, N), lambda i: (i, 0)),
            ),
            compiler_params=pltpu.CompilerParams(
                dimension_semantics=("parallel",),
                vmem_limit_bytes=vmem_limit,
            ),
            cost_estimate=cost,
        )(x_p, w_p, b_p)
    else:
        out = pl.pallas_call(
            _linear_ktiled_kernel,
            out_shape=jax.ShapeDtypeStruct((Bp, N), jnp.float32),
            grid_spec=pltpu.PrefetchScalarGridSpec(
                num_scalar_prefetch=0,
                grid=(m_tiles, k_tiles),
                in_specs=[
                    pl.BlockSpec((TM, TK), lambda i, k: (i, k)),  # x
                    pl.BlockSpec((TK, N), lambda i, k: (k, 0)),   # w (N unpadded)
                    pl.BlockSpec((1, N), lambda i, k: (0, 0)),    # bias
                ],
                out_specs=pl.BlockSpec((TM, N), lambda i, k: (i, 0)),
            ),
            compiler_params=pltpu.CompilerParams(
                dimension_semantics=("parallel", "arbitrary"),
                vmem_limit_bytes=vmem_limit,
            ),
            cost_estimate=cost,
        )(x_p, w_p, b_p)

    return out[:B, :N]


def init_params(size, key):
    """Deterministic init matching nn.Linear(3*size*size, 10) shapes.

    PyTorch nn.Linear default: U(-1/sqrt(fan_in), 1/sqrt(fan_in)).  Weight is
    returned transposed (K, 10) for the kernel.
    """
    K = 3 * size * size
    N = 10
    k_w, k_b = jax.random.split(key)
    bound = 1.0 / jnp.sqrt(K)
    w_torch = jax.random.uniform(k_w, (N, K), jnp.float32, -bound, bound)
    b = jax.random.uniform(k_b, (N,), jnp.float32, -bound, bound)
    return w_torch.T, b


if __name__ == "__main__":
    size = 16          # PyTorch module param `size`
    batch = 2
    key = jax.random.PRNGKey(0)
    k_x, k_p = jax.random.split(key)

    x = jax.random.normal(k_x, (batch, 3, size, size), jnp.float32)
    w_kt, b = init_params(size, k_p)

    # One-time parameter prep (reused across forward calls).
    w_p, b_p = prepare_params(w_kt, b)

    out = simple_model_forward(x, w_p, b_p)
    out = jax.block_until_ready(out)

    # Primary correctness gate: bf16-input / f32-accumulate reference
    # (matches the kernel's MXU numerics).
    ref_bf16 = (x.reshape(batch, -1).astype(jnp.bfloat16).astype(jnp.float32)
                @ w_kt.astype(jnp.bfloat16).astype(jnp.float32)) + b
    # Secondary, loose check vs the f32 PyTorch-equivalent math; bf16 input
    # rounding error grows ~sqrt(K), so the tolerance scales with K.
    K = 3 * size * size
    ref_f32 = x.reshape(batch, -1) @ w_kt + b
    tol_f32 = 3e-2 * max(1.0, float(K / 768.0) ** 0.5)

    assert out.shape == (batch, 10)
    assert jnp.allclose(out, ref_bf16, atol=2e-3, rtol=2e-3)
    assert jnp.allclose(out, ref_f32, atol=tol_f32, rtol=tol_f32)
    print("KERNEL_OK")
</pallas_src>

<mosaic_0001>
module attributes {stable_mosaic.version = 11 : i64} {
  func.func @_linear_single_k_kernel(%arg0: i32, %arg1: memref<16x768xf32, #tpu.memory_space<vmem>>, %arg2: memref<768x10xbf16, #tpu.memory_space<vmem>>, %arg3: memref<1x10xf32, #tpu.memory_space<vmem>>, %arg4: memref<16x10xf32, #tpu.memory_space<vmem>>) attributes {dimension_semantics = [#tpu.dimension_semantics<parallel>], iteration_bounds = array<i64: 1>, scalar_prefetch = 0 : i64, scratch_operands = 0 : i64, tpu.core_type = #tpu.core_type<tc>, window_params = [{transform_indices = @transform_0, window_bounds = array<i64: 16, 768>}, {pipeline_mode = #tpu.pipeline_mode<synchronous>, transform_indices = @transform_1, window_bounds = array<i64: 768, 10>}, {pipeline_mode = #tpu.pipeline_mode<synchronous>, transform_indices = @transform_2, window_bounds = array<i64: 1, 10>}, {transform_indices = @transform_3, window_bounds = array<i64: 16, 10>}]} {
    %c0 = arith.constant 0 : index
    %c0_0 = arith.constant 0 : index
    %0 = vector.load %arg1[%c0, %c0_0] : memref<16x768xf32, #tpu.memory_space<vmem>>, vector<16x768xf32>
    %1 = arith.truncf %0 : vector<16x768xf32> to vector<16x768xbf16>
    %c0_1 = arith.constant 0 : index
    %c0_2 = arith.constant 0 : index
    %2 = vector.load %arg2[%c0_1, %c0_2] : memref<768x10xbf16, #tpu.memory_space<vmem>>, vector<768x10xbf16>
    %cst = arith.constant dense<0.000000e+00> : vector<16x10xf32>
    %3 = tpu.matmul %1, %2, %cst {dimension_numbers = #tpu.dot_dimension_numbers<[1], [0], [0], [1], [0, 0, 1, 1], [], []>} : vector<16x768xbf16>, vector<768x10xbf16>, vector<16x10xf32> -> vector<16x10xf32>
    %c0_3 = arith.constant 0 : index
    %c0_4 = arith.constant 0 : index
    %4 = vector.load %arg3[%c0_3, %c0_4] : memref<1x10xf32, #tpu.memory_space<vmem>>, vector<1x10xf32>
    %5 = vector.broadcast %4 : vector<1x10xf32> to vector<16x10xf32>
    %6 = arith.addf %3, %5 : vector<16x10xf32>
    %c0_5 = arith.constant 0 : index
    %c0_6 = arith.constant 0 : index
    %7 = vector.load %arg4[%c0_5, %c0_6] : memref<16x10xf32, #tpu.memory_space<vmem>>, vector<16x10xf32>
    tpu.vector_store %arg4[%c0_5, %c0_6], %6 {strides = array<i32>} : memref<16x10xf32, #tpu.memory_space<vmem>>, vector<16x10xf32>,
    return
  }
  func.func @transform_0(%arg0: i32) -> (i32, i32) {
    %c0_i32 = arith.constant 0 : i32
    %c0_i32_0 = arith.constant 0 : i32
    return %arg0, %c0_i32 : i32, i32
  }
  func.func @transform_1(%arg0: i32) -> (i32, i32) {
    %c0_i32 = arith.constant 0 : i32
    %c0_i32_0 = arith.constant 0 : i32
    %c0_i32_1 = arith.constant 0 : i32
    return %c0_i32, %c0_i32_0 : i32, i32
  }
  func.func @transform_2(%arg0: i32) -> (i32, i32) {
    %c0_i32 = arith.constant 0 : i32
    %c0_i32_0 = arith.constant 0 : i32
    %c0_i32_1 = arith.constant 0 : i32
    return %c0_i32, %c0_i32_0 : i32, i32
  }
  func.func @transform_3(%arg0: i32) -> (i32, i32) {
    %c0_i32 = arith.constant 0 : i32
    %c0_i32_0 = arith.constant 0 : i32
    return %arg0, %c0_i32 : i32, i32
  }
}

</mosaic_0001>

<llo_original>
// kernel: tpu_custom_call.1
$region0: #{tpu_custom_call.1}
  #allocation0 [shape = 'u32[]', space=smem, size = 0x4, offset = 0x4, fixed_abs, tag = 'smem constant byte address 0x4 - core index']
  #allocation1 [shape = 'u32[144,128]{1,0:T(1,128)}', space=vmem, size = 0x12000, scoped, tag = 'internal scratch']
  %s0 = inlined_call_operand.vmem [shape: f32[16,768], index: 0, kind: input, shape index: {}]
  %s1 = inlined_call_operand.vmem [shape: bf16[768,10], index: 1, kind: input, shape index: {}]
  %s2 = inlined_call_operand.vmem [shape: f32[1,10], index: 2, kind: input, shape index: {}]
  %s3 = inlined_call_operand.hbm [shape: f32[16,10], index: 3, kind: output, shape index: {}]
  %s4 = sld [smem:[#allocation0]]
  $region22: #{tpu_custom_call.1} parent=0
    _
  %s6 = ssub.s32 1, %s4
  %s7 = scalar_select 0, %s6, %s4
  $region1: #{tpu_custom_call.1} parent=0
    #allocation2 [shape = 'u8[8192]{0}', space=vmem, size = 0x2000, scoped, tag = 'output window, operand 0, single buffered']
    #allocation3 [shape = 's32[1]{0}', space=sflag, size = 0x4, scoped, tag = 'scoped memory for tpu_custom_call.1']
    %8 = vsyncpa [#allocation3], 0
    // Predicated region
    $region2: #{tpu_custom_call.1} parent=1 // pred_check
      _
    $region3: #{tpu_custom_call.1} parent=1 // pred_check_branch
      %10 = sbr.rel (0) target = $region5
    $region4: #{tpu_custom_call.1} parent=1 // pred_region
      _
    $region5: #{tpu_custom_call.1} parent=1 // pred_fallthru
      _
    // Predicated region
    $region6: #{tpu_custom_call.1} parent=1 // pred_check
      _
    $region7: #{tpu_custom_call.1} parent=1 // pred_check_branch
      %12 = sbr.rel (0) target = $region9
    $region8: #{tpu_custom_call.1} parent=1 // pred_region
      _
    $region9: #{tpu_custom_call.1} parent=1 // pred_fallthru
      _
    // Predicated region
    $region10: #{tpu_custom_call.1} parent=1 // pred_check
      _
    $region11: #{tpu_custom_call.1} parent=1 // pred_check_branch
      %14 = sbr.rel (0) target = $region13
    $region12: #{tpu_custom_call.1} parent=1 // pred_region
      _
    $region13: #{tpu_custom_call.1} parent=1 // pred_fallthru
      _
    %v16 = vld [vmem:[%s0] sm:$0xff]
    %v17 = vld [vmem:[%s0 + $0x8] sm:$0xff]
    %v18 = vld [vmem:[%s0 + $0x10] sm:$0xff]
    %v19 = vld [vmem:[%s0 + $0x18] sm:$0xff]
    %v20 = vld [vmem:[%s0 + $0x20] sm:$0xff]
    %v21 = vld [vmem:[%s0 + $0x28] sm:$0xff]
    %v22 = vld [vmem:[%s0 + $0x30] sm:$0xff]
    %v23 = vld [vmem:[%s0 + $0x38] sm:$0xff]
    %v24 = vld [vmem:[%s0 + $0x40] sm:$0xff]
    %v25 = vld [vmem:[%s0 + $0x48] sm:$0xff]
    %v26 = vld [vmem:[%s0 + $0x50] sm:$0xff]
    %v27 = vld [vmem:[%s0 + $0x58] sm:$0xff]
    %v28 = vpack.c.bf16 %v22, %v16
    %v29 = vpack.c.bf16 %v23, %v17
    %v30 = vpack.c.bf16 %v24, %v18
    %v31 = vpack.c.bf16 %v25, %v19
    %v32 = vpack.c.bf16 %v26, %v20
    %v33 = vpack.c.bf16 %v27, %v21
    %v34 = vld [vmem:[%s1] sm:$0xf]
    %v35 = vld [vmem:[%s1 + $0x4] sm:$0xf]
    %v36 = vld [vmem:[%s1 + $0x8] sm:$0xf]
    %v37 = vld [vmem:[%s1 + $0xc] sm:$0xf]
    %v38 = vld [vmem:[%s1 + $0x10] sm:$0xf]
    %v39 = vld [vmem:[%s1 + $0x14] sm:$0xf]
    %v40 = vld [vmem:[%s1 + $0x18] sm:$0xf]
    %v41 = vld [vmem:[%s1 + $0x1c] sm:$0xf]
    %v42 = vld [vmem:[%s1 + $0x20] sm:$0xf]
    %v43 = vld [vmem:[%s1 + $0x24] sm:$0xf]
    %v44 = vld [vmem:[%s1 + $0x28] sm:$0xf]
    %v45 = vld [vmem:[%s1 + $0x2c] sm:$0xf]
    %v46 = vld [vmem:[%s1 + $0x30] sm:$0xf]
    %v47 = vld [vmem:[%s1 + $0x34] sm:$0xf]
    %v48 = vld [vmem:[%s1 + $0x38] sm:$0xf]
    %v49 = vld [vmem:[%s1 + $0x3c] sm:$0xf]
    %v50 = vld [vmem:[%s1 + $0x40] sm:$0xf]
    %v51 = vld [vmem:[%s1 + $0x44] sm:$0xf]
    %v52 = vld [vmem:[%s1 + $0x48] sm:$0xf]
    %v53 = vld [vmem:[%s1 + $0x4c] sm:$0xf]
    %v54 = vld [vmem:[%s1 + $0x50] sm:$0xf]
    %v55 = vld [vmem:[%s1 + $0x54] sm:$0xf]
    %v56 = vld [vmem:[%s1 + $0x58] sm:$0xf]
    %v57 = vld [vmem:[%s1 + $0x5c] sm:$0xf]
    %v58 = vld [vmem:[%s1 + $0x60] sm:$0xf]
    %v59 = vld [vmem:[%s1 + $0x64] sm:$0xf]
    %v60 = vld [vmem:[%s1 + $0x68] sm:$0xf]
    %v61 = vld [vmem:[%s1 + $0x6c] sm:$0xf]
    %v62 = vld [vmem:[%s1 + $0x70] sm:$0xf]
    %v63 = vld [vmem:[%s1 + $0x74] sm:$0xf]
    %v64 = vld [vmem:[%s1 + $0x78] sm:$0xf]
    %v65 = vld [vmem:[%s1 + $0x7c] sm:$0xf]
    %v66 = vld [vmem:[%s1 + $0x80] sm:$0xf]
    %v67 = vld [vmem:[%s1 + $0x84] sm:$0xf]
    %v68 = vld [vmem:[%s1 + $0x88] sm:$0xf]
    %v69 = vld [vmem:[%s1 + $0x8c] sm:$0xf]
    %v70 = vld [vmem:[%s1 + $0x90] sm:$0xf]
    %v71 = vld [vmem:[%s1 + $0x94] sm:$0xf]
    %v72 = vld [vmem:[%s1 + $0x98] sm:$0xf]
    %v73 = vld [vmem:[%s1 + $0x9c] sm:$0xf]
    %v74 = vld [vmem:[%s1 + $0xa0] sm:$0xf]
    %v75 = vld [vmem:[%s1 + $0xa4] sm:$0xf]
    %v76 = vld [vmem:[%s1 + $0xa8] sm:$0xf]
    %v77 = vld [vmem:[%s1 + $0xac] sm:$0xf]
    %v78 = vld [vmem:[%s1 + $0xb0] sm:$0xf]
    %v79 = vld [vmem:[%s1 + $0xb4] sm:$0xf]
    %v80 = vld [vmem:[%s1 + $0xb8] sm:$0xf]
    %v81 = vld [vmem:[%s1 + $0xbc] sm:$0xf]
    %v82 = vld [vmem:[%s1 + $0xc0] sm:$0xf]
    %v83 = vld [vmem:[%s1 + $0xc4] sm:$0xf]
    %v84 = vld [vmem:[%s1 + $0xc8] sm:$0xf]
    %v85 = vld [vmem:[%s1 + $0xcc] sm:$0xf]
    %v86 = vld [vmem:[%s1 + $0xd0] sm:$0xf]
    %v87 = vld [vmem:[%s1 + $0xd4] sm:$0xf]
    %v88 = vld [vmem:[%s1 + $0xd8] sm:$0xf]
    %v89 = vld [vmem:[%s1 + $0xdc] sm:$0xf]
    %v90 = vld [vmem:[%s1 + $0xe0] sm:$0xf]
    %v91 = vld [vmem:[%s1 + $0xe4] sm:$0xf]
    %v92 = vld [vmem:[%s1 + $0xe8] sm:$0xf]
    %v93 = vld [vmem:[%s1 + $0xec] sm:$0xf]
    %v94 = vld [vmem:[%s1 + $0xf0] sm:$0xf]
    %v95 = vld [vmem:[%s1 + $0xf4] sm:$0xf]
    %v96 = vld [vmem:[%s1 + $0xf8] sm:$0xf]
    %v97 = vld [vmem:[%s1 + $0xfc] sm:$0xf]
    %v98 = vld [vmem:[%s1 + $0x100] sm:$0xf]
    %v99 = vld [vmem:[%s1 + $0x104] sm:$0xf]
    %v100 = vld [vmem:[%s1 + $0x108] sm:$0xf]
    %v101 = vld [vmem:[%s1 + $0x10c] sm:$0xf]
    %v102 = vld [vmem:[%s1 + $0x110] sm:$0xf]
    %v103 = vld [vmem:[%s1 + $0x114] sm:$0xf]
    %v104 = vld [vmem:[%s1 + $0x118] sm:$0xf]
    %v105 = vld [vmem:[%s1 + $0x11c] sm:$0xf]
    %v106 = vld [vmem:[%s1 + $0x120] sm:$0xf]
    %v107 = vld [vmem:[%s1 + $0x124] sm:$0xf]
    %v108 = vld [vmem:[%s1 + $0x128] sm:$0xf]
    %v109 = vld [vmem:[%s1 + $0x12c] sm:$0xf]
    %v110 = vld [vmem:[%s1 + $0x130] sm:$0xf]
    %v111 = vld [vmem:[%s1 + $0x134] sm:$0xf]
    %v112 = vld [vmem:[%s1 + $0x138] sm:$0xf]
    %v113 = vld [vmem:[%s1 + $0x13c] sm:$0xf]
    %v114 = vld [vmem:[%s1 + $0x140] sm:$0xf]
    %v115 = vld [vmem:[%s1 + $0x144] sm:$0xf]
    %v116 = vld [vmem:[%s1 + $0x148] sm:$0xf]
    %v117 = vld [vmem:[%s1 + $0x14c] sm:$0xf]
    %v118 = vld [vmem:[%s1 + $0x150] sm:$0xf]
    %v119 = vld [vmem:[%s1 + $0x154] sm:$0xf]
    %v120 = vld [vmem:[%s1 + $0x158] sm:$0xf]
    %v121 = vld [vmem:[%s1 + $0x15c] sm:$0xf]
    %v122 = vld [vmem:[%s1 + $0x160] sm:$0xf]
    %v123 = vld [vmem:[%s1 + $0x164] sm:$0xf]
    %v124 = vld [vmem:[%s1 + $0x168] sm:$0xf]
    %v125 = vld [vmem:[%s1 + $0x16c] sm:$0xf]
    %v126 = vld [vmem:[%s1 + $0x170] sm:$0xf]
    %v127 = vld [vmem:[%s1 + $0x174] sm:$0xf]
    %v128 = vld [vmem:[%s1 + $0x178] sm:$0xf]
    %v129 = vld [vmem:[%s1 + $0x17c] sm:$0xf]
    %v130 = vld [vmem:[%s2] sm:$0x1]
    %v132 = vlaneseq
    %v133 = vshrl.u32 %v132, 7
    %v134 = vsub.s32 0, %v133
    %v135 = vrot.slane %v130, %v134
    %v233 = vunpack.c.l.b16 %v34
    %v234 = vunpack.c.l.b16 %v35
    %v235 = vunpack.c.l.b16 %v36
    %v236 = vunpack.c.l.b16 %v37
    %v237 = vunpack.c.l.b16 %v38
    %v238 = vunpack.c.l.b16 %v39
    %v239 = vunpack.c.l.b16 %v40
    %v240 = vunpack.c.l.b16 %v41
    %v241 = vunpack.c.l.b16 %v42
    %v242 = vunpack.c.l.b16 %v43
    %v243 = vunpack.c.l.b16 %v44
    %v244 = vunpack.c.l.b16 %v45
    %v245 = vunpack.c.l.b16 %v46
    %v246 = vunpack.c.l.b16 %v47
    %v247 = vunpack.c.l.b16 %v48
    %v248 = vunpack.c.l.b16 %v49
    %v249 = vunpack.c.l.b16 %v50
    %v250 = vunpack.c.l.b16 %v51
    %v251 = vunpack.c.l.b16 %v52
    %v252 = vunpack.c.l.b16 %v53
    %v253 = vunpack.c.l.b16 %v54
    %v254 = vunpack.c.l.b16 %v55
    %v255 = vunpack.c.l.b16 %v56
    %v256 = vunpack.c.l.b16 %v57
    %v257 = vunpack.c.l.b16 %v58
    %v258 = vunpack.c.l.b16 %v59
    %v259 = vunpack.c.l.b16 %v60
    %v260 = vunpack.c.l.b16 %v61
    %v261 = vunpack.c.l.b16 %v62
    %v262 = vunpack.c.l.b16 %v63
    %v263 = vunpack.c.l.b16 %v64
    %v264 = vunpack.c.l.b16 %v65
    %v265 = vunpack.c.l.b16 %v66
    %v266 = vunpack.c.l.b16 %v67
    %v267 = vunpack.c.l.b16 %v68
    %v268 = vunpack.c.l.b16 %v69
    %v269 = vunpack.c.l.b16 %v70
    %v270 = vunpack.c.l.b16 %v71
    %v271 = vunpack.c.l.b16 %v72
    %v272 = vunpack.c.l.b16 %v73
    %v273 = vunpack.c.l.b16 %v74
    %v274 = vunpack.c.l.b16 %v75
    %v275 = vunpack.c.l.b16 %v76
    %v276 = vunpack.c.l.b16 %v77
    %v277 = vunpack.c.l.b16 %v78
    %v278 = vunpack.c.l.b16 %v79
    %v279 = vunpack.c.l.b16 %v80
    %v280 = vunpack.c.l.b16 %v81
    %v281 = vunpack.c.l.b16 %v82
    %v282 = vunpack.c.l.b16 %v83
    %v283 = vunpack.c.l.b16 %v84
    %v284 = vunpack.c.l.b16 %v85
    %v285 = vunpack.c.l.b16 %v86
    %v286 = vunpack.c.l.b16 %v87
    %v287 = vunpack.c.l.b16 %v88
    %v288 = vunpack.c.l.b16 %v89
    %v289 = vunpack.c.l.b16 %v90
    %v290 = vunpack.c.l.b16 %v91
    %v291 = vunpack.c.l.b16 %v92
    %v292 = vunpack.c.l.b16 %v93
    %v293 = vunpack.c.l.b16 %v94
    %v294 = vunpack.c.l.b16 %v95
    %v295 = vunpack.c.l.b16 %v96
    %v296 = vunpack.c.l.b16 %v97
    %v297 = vunpack.c.l.b16 %v98
    %v298 = vunpack.c.l.b16 %v99
    %v299 = vunpack.c.l.b16 %v100
    %v300 = vunpack.c.l.b16 %v101
    %v301 = vunpack.c.l.b16 %v102
    %v302 = vunpack.c.l.b16 %v103
    %v303 = vunpack.c.l.b16 %v104
    %v304 = vunpack.c.l.b16 %v105
    %v305 = vunpack.c.l.b16 %v106
    %v306 = vunpack.c.l.b16 %v107
    %v307 = vunpack.c.l.b16 %v108
    %v308 = vunpack.c.l.b16 %v109
    %v309 = vunpack.c.l.b16 %v110
    %v310 = vunpack.c.l.b16 %v111
    %v311 = vunpack.c.l.b16 %v112
    %v312 = vunpack.c.l.b16 %v113
    %v313 = vunpack.c.l.b16 %v114
    %v314 = vunpack.c.l.b16 %v115
    %v315 = vunpack.c.l.b16 %v116
    %v316 = vunpack.c.l.b16 %v117
    %v317 = vunpack.c.l.b16 %v118
    %v318 = vunpack.c.l.b16 %v119
    %v319 = vunpack.c.l.b16 %v120
    %v320 = vunpack.c.l.b16 %v121
    %v321 = vunpack.c.l.b16 %v122
    %v322 = vunpack.c.l.b16 %v123
    %v323 = vunpack.c.l.b16 %v124
    %v324 = vunpack.c.l.b16 %v125
    %v325 = vunpack.c.l.b16 %v126
    %v326 = vunpack.c.l.b16 %v127
    %v327 = vunpack.c.l.b16 %v128
    %v328 = vunpack.c.l.b16 %v129
    %v329 = vpack.c.b16 %v234, %v233
    %v330 = vpack.c.b16 %v236, %v235
    %v331 = vpack.c.b16 %v238, %v237
    %v332 = vpack.c.b16 %v240, %v239
    %v333 = vpack.c.b16 %v242, %v241
    %v334 = vpack.c.b16 %v244, %v243
    %v335 = vpack.c.b16 %v246, %v245
    %v336 = vpack.c.b16 %v248, %v247
    %v337 = vpack.c.b16 %v250, %v249
    %v338 = vpack.c.b16 %v252, %v251
    %v339 = vpack.c.b16 %v254, %v253
    %v340 = vpack.c.b16 %v256, %v255
    %v341 = vpack.c.b16 %v258, %v257
    %v342 = vpack.c.b16 %v260, %v259
    %v343 = vpack.c.b16 %v262, %v261
    %v344 = vpack.c.b16 %v264, %v263
    %v345 = vpack.c.b16 %v266, %v265
    %v346 = vpack.c.b16 %v268, %v267
    %v347 = vpack.c.b16 %v270, %v269
    %v348 = vpack.c.b16 %v272, %v271
    %v349 = vpack.c.b16 %v274, %v273
    %v350 = vpack.c.b16 %v276, %v275
    %v351 = vpack.c.b16 %v278, %v277
    %v352 = vpack.c.b16 %v280, %v279
    %v353 = vpack.c.b16 %v282, %v281
    %v354 = vpack.c.b16 %v284, %v283
    %v355 = vpack.c.b16 %v286, %v285
    %v356 = vpack.c.b16 %v288, %v287
    %v357 = vpack.c.b16 %v290, %v289
    %v358 = vpack.c.b16 %v292, %v291
    %v359 = vpack.c.b16 %v294, %v293
    %v360 = vpack.c.b16 %v296, %v295
    %v361 = vpack.c.b16 %v298, %v297
    %v362 = vpack.c.b16 %v300, %v299
    %v363 = vpack.c.b16 %v302, %v301
    %v364 = vpack.c.b16 %v304, %v303
    %v365 = vpack.c.b16 %v306, %v305
    %v366 = vpack.c.b16 %v308, %v307
    %v367 = vpack.c.b16 %v310, %v309
    %v368 = vpack.c.b16 %v312, %v311
    %v369 = vpack.c.b16 %v314, %v313
    %v370 = vpack.c.b16 %v316, %v315
    %v371 = vpack.c.b16 %v318, %v317
    %v372 = vpack.c.b16 %v320, %v319
    %v373 = vpack.c.b16 %v322, %v321
    %v374 = vpack.c.b16 %v324, %v323
    %v375 = vpack.c.b16 %v326, %v325
    %v376 = vpack.c.b16 %v328, %v327
    %425 = vmatprep.subr.bf16.mxu0 0
    %426 = vmatpush1.bf16.msra.mxu0 %v329
    %427 = vmatprep.subr.bf16.mxu0 0
    %428 = vmatpush1.bf16.msra.mxu0 %v330
    %429 = vmatprep.subr.bf16.mxu0 0
    %430 = vmatpush1.bf16.msra.mxu0 %v331
    %431 = vmatprep.subr.bf16.mxu0 0
    %432 = vmatpush1.bf16.msra.mxu0 %v332
    %433 = vmatprep.subr.bf16.mxu0 0
    %434 = vmatpush1.bf16.msra.mxu0 %v333
    %435 = vmatprep.subr.bf16.mxu0 0
    %436 = vmatpush1.bf16.msra.mxu0 %v334
    %437 = vmatprep.subr.bf16.mxu0 0
    %438 = vmatpush1.bf16.msra.mxu0 %v335
    %439 = vmatprep.subr.bf16.mxu0 0
    %440 = vmatpush1.bf16.msra.mxu0 %v336
    %441 = vmatprep.subr.bf16.mxu0 0
    %442 = vmatpush1.bf16.msra.mxu0 %v337
    %443 = vmatprep.subr.bf16.mxu0 0
    %444 = vmatpush1.bf16.msra.mxu0 %v338
    %445 = vmatprep.subr.bf16.mxu0 0
    %446 = vmatpush1.bf16.msra.mxu0 %v339
    %447 = vmatprep.subr.bf16.mxu0 0
    %448 = vmatpush1.bf16.msra.mxu0 %v340
    %449 = vmatprep.subr.bf16.mxu0 0
    %450 = vmatpush1.bf16.msra.mxu0 %v341
    %451 = vmatprep.subr.bf16.mxu0 0
    %452 = vmatpush1.bf16.msra.mxu0 %v342
    %453 = vmatprep.subr.bf16.mxu0 0
    %454 = vmatpush1.bf16.msra.mxu0 %v343
    %455 = vmatprep.subr.bf16.mxu0 0
    %456 = vmatpush1.bf16.msra.mxu0 %v344
    %457 = vmatprep.mubr.bf16.mxu0 %v29
    %458 = vmatmul.mubr.bf16.gmra.mrb[0].mxu0 %v28
    %v459 = vpop.f32.mrb[0].mxu0
    %v460 = vadd.f32 %v135, %v459
    %v461 = vpop.f32.mrb[0].mxu0
    %v462 = vpop.f32.mrb[0].mxu0
    %v463 = vadd.f32 %v135, %v462
    %v464 = vpop.f32.mrb[0].mxu0
    %465 = vdwg.mxu0
    %466 = vmatprep.subr.bf16.mxu0 0
    %467 = vmatpush1.bf16.msra.mxu0 %v345
    %468 = vmatprep.subr.bf16.mxu0 0
    %469 = vmatpush1.bf16.msra.mxu0 %v346
    %470 = vmatprep.subr.bf16.mxu0 0
    %471 = vmatpush1.bf16.msra.mxu0 %v347
    %472 = vmatprep.subr.bf16.mxu0 0
    %473 = vmatpush1.bf16.msra.mxu0 %v348
    %474 = vmatprep.subr.bf16.mxu0 0
    %475 = vmatpush1.bf16.msra.mxu0 %v349
    %476 = vmatprep.subr.bf16.mxu0 0
    %477 = vmatpush1.bf16.msra.mxu0 %v350
    %478 = vmatprep.subr.bf16.mxu0 0
    %479 = vmatpush1.bf16.msra.mxu0 %v351
    %480 = vmatprep.subr.bf16.mxu0 0
    %481 = vmatpush1.bf16.msra.mxu0 %v352
    %482 = vmatprep.subr.bf16.mxu0 0
    %483 = vmatpush1.bf16.msra.mxu0 %v353
    %484 = vmatprep.subr.bf16.mxu0 0
    %485 = vmatpush1.bf16.msra.mxu0 %v354
    %486 = vmatprep.subr.bf16.mxu0 0
    %487 = vmatpush1.bf16.msra.mxu0 %v355
    %488 = vmatprep.subr.bf16.mxu0 0
    %489 = vmatpush1.bf16.msra.mxu0 %v356
    %490 = vmatprep.subr.bf16.mxu0 0
    %491 = vmatpush1.bf16.msra.mxu0 %v357
    %492 = vmatprep.subr.bf16.mxu0 0
    %493 = vmatpush1.bf16.msra.mxu0 %v358
    %494 = vmatprep.subr.bf16.mxu0 0
    %495 = vmatpush1.bf16.msra.mxu0 %v359
    %496 = vmatprep.subr.bf16.mxu0 0
    %497 = vmatpush1.bf16.msra.mxu0 %v360
    %498 = vmatprep.mubr.bf16.mxu0 %v31
    %499 = vmatmul.mubr.bf16.gmra.mrb[0].mxu0 %v30
    %v500 = vpop.f32.mrb[0].mxu0
    %v501 = vadd.f32 %v460, %v500
    %v502 = vpop.f32.mrb[0].mxu0
    %v503 = vpop.f32.mrb[0].mxu0
    %v504 = vadd.f32 %v463, %v503
    %v505 = vpop.f32.mrb[0].mxu0
    %506 = vdwg.mxu0
    %507 = vmatprep.subr.bf16.mxu0 0
    %508 = vmatpush1.bf16.msra.mxu0 %v361
    %509 = vmatprep.subr.bf16.mxu0 0
    %510 = vmatpush1.bf16.msra.mxu0 %v362
    %511 = vmatprep.subr.bf16.mxu0 0
    %512 = vmatpush1.bf16.msra.mxu0 %v363
    %513 = vmatprep.subr.bf16.mxu0 0
    %514 = vmatpush1.bf16.msra.mxu0 %v364
    %515 = vmatprep.subr.bf16.mxu0 0
    %516 = vmatpush1.bf16.msra.mxu0 %v365
    %517 = vmatprep.subr.bf16.mxu0 0
    %518 = vmatpush1.bf16.msra.mxu0 %v366
    %519 = vmatprep.subr.bf16.mxu0 0
    %520 = vmatpush1.bf16.msra.mxu0 %v367
    %521 = vmatprep.subr.bf16.mxu0 0
    %522 = vmatpush1.bf16.msra.mxu0 %v368
    %523 = vmatprep.subr.bf16.mxu0 0
    %524 = vmatpush1.bf16.msra.mxu0 %v369
    %525 = vmatprep.subr.bf16.mxu0 0
    %526 = vmatpush1.bf16.msra.mxu0 %v370
    %527 = vmatprep.subr.bf16.mxu0 0
    %528 = vmatpush1.bf16.msra.mxu0 %v371
    %529 = vmatprep.subr.bf16.mxu0 0
    %530 = vmatpush1.bf16.msra.mxu0 %v372
    %531 = vmatprep.subr.bf16.mxu0 0
    %532 = vmatpush1.bf16.msra.mxu0 %v373
    %533 = vmatprep.subr.bf16.mxu0 0
    %534 = vmatpush1.bf16.msra.mxu0 %v374
    %535 = vmatprep.subr.bf16.mxu0 0
    %536 = vmatpush1.bf16.msra.mxu0 %v375
    %537 = vmatprep.subr.bf16.mxu0 0
    %538 = vmatpush1.bf16.msra.mxu0 %v376
    %539 = vmatprep.mubr.bf16.mxu0 %v33
    %540 = vmatmul.mubr.bf16.gmra.mrb[0].mxu0 %v32
    %v541 = vpop.f32.mrb[0].mxu0
    %v542 = vadd.f32 %v501, %v541
    %v543 = vpop.f32.mrb[0].mxu0
    %v544 = vpop.f32.mrb[0].mxu0
    %v545 = vadd.f32 %v504, %v544
    %v546 = vpop.f32.mrb[0].mxu0
    %547 = vdwg.mxu0
    %vm548 = vcmask 80896
    %549 = vst.msk [vmem:[#allocation2] sm:$0xff] %vm548, %v542
    %550 = vst.msk [vmem:[#allocation2 + $0x8] sm:$0xff] %vm548, %v545
    // Predicated region
    $region14: #{tpu_custom_call.1} parent=1 // pred_check
      _
    $region15: #{tpu_custom_call.1} parent=1 // pred_check_branch
      %552 = sbr.rel (0) target = $region17
    $region16: #{tpu_custom_call.1} parent=1 // pred_region
      %s554 = ssub.s32 256, 256
      %555 = vsyncadd [#allocation3], %s554
      %s556 = sshll.u32 [#allocation2], 4
      %s557 = int_to_ptr.vmem [resolvable:$true] %s556
      %562 = dma.vmem_to_hbm [thread:$0]  %s557, 256, %s3, [#allocation3], 128, 128, 8
    $region17: #{tpu_custom_call.1} parent=1 // pred_fallthru
      _
    // Predicated region
    $region18: #{tpu_custom_call.1} parent=1 // pred_check
      _
    $region19: #{tpu_custom_call.1} parent=1 // pred_check_branch
      %564 = sbr.rel (0) target = $region21
    $region20: #{tpu_custom_call.1} parent=1 // pred_region
      %565 = dma.done [#allocation3], 256
    $region21: #{tpu_custom_call.1} parent=1 // pred_fallthru
      _
    %566 = vsyncpa [#allocation3], 1

</llo_original>
